<compile_context>
chip_gen: v7x
topology: tpu7x:2x2x1
jax: 0.10.0
libtpu: 0.0.40
codegen_flags: <defaults>
</compile_context>

<pallas_src>
import functools
import math

import jax
import jax.numpy as jnp
from jax.experimental import pallas as pl
from jax.experimental.pallas import tpu as pltpu


# ---------------------------------------------------------------------------
# VMEM-aware tile selection
# ---------------------------------------------------------------------------
def _vmem_capacity_bytes():
    """Physical VMEM of the local TPU generation, with a v7x-safe fallback."""
    try:
        info = pltpu.get_tpu_info()
        for name in ("vmem_capacity_bytes", "vmem_size_bytes", "vmem_bytes"):
            v = getattr(info, name, None)
            if v:
                return int(v)
    except Exception:
        pass
    return 64 * 1024 * 1024          # v7x has the smallest VMEM (64 MiB)


def _choose_tiles(B, S, Din, Dout, x_itemsize, vmem_cap, seq_tile=None):
    """Pick (batch rows per block, seq rows per tile) against the VMEM budget."""
    sub = {4: 8, 2: 16, 1: 32}.get(x_itemsize, 8)          # sublane packing
    budget = min(int(vmem_cap * 0.6), 80 * 1024 * 1024)    # working-set target
    reserve = 2 * Din * Dout * 4 + 16 * Din * 4 + (1 << 16)  # weight + scratch
    x_budget = max(budget - reserve, 2 * sub * Din * x_itemsize)
    # rows per x buffer (the BlockSpec pipeline double-buffers x)
    rows = max(sub, x_budget // (2 * Din * x_itemsize))
    if seq_tile is not None:                                 # explicit cap (tests)
        rows = min(rows, max(sub, -(-int(seq_tile) // sub) * sub))

    if rows >= S:
        ts = S                                               # full sequence per tile
    else:
        ts = max(sub, (rows // sub) * sub)                   # multiple of sublane

    tb = 1
    if ts == S:
        tb_cap = max(1, rows // max(S, 1))
        if B >= 2:
            # keep >= 2 batch blocks so the "parallel" batch axis can shard
            # across both TensorCores on v7x (no-op on 1-TC v5e/v6e).
            tb_cap = min(tb_cap, B // 2)
        for d in range(min(tb_cap, B), 0, -1):               # largest divisor of B
            if B % d == 0:
                tb = d
                break
    return tb, ts


# ---------------------------------------------------------------------------
# Fused kernel: per (batch-block, seq-tile) grid step
#   acc[b] += sum_over_valid_rows( x_tile[b] )        (f32 accumulation)
# last seq tile:  out[b] = (acc[b] / len[b]) @ W      (bias added in wrapper)
# ---------------------------------------------------------------------------
def _classifier_kernel(lens_ref, x_ref, w_ref, o_ref, acc_ref, *, tb):
    bi = pl.program_id(0)          # batch-block index   ("parallel")
    si = pl.program_id(1)          # sequence-tile index ("arbitrary" reduction)
    ts = x_ref.shape[1]

    @pl.when(si == 0)
    def _init():
        acc_ref[...] = jnp.zeros_like(acc_ref)

    x = x_ref[...].astype(jnp.float32)                      # (tb, ts, Din)

    tile_start = si * ts
    tile_end = tile_start + ts
    min_len = lens_ref[bi * tb]
    for j in range(1, tb):
        min_len = jnp.minimum(min_len, lens_ref[bi * tb + j])

    # Fast path: every row of every batch element in this tile is valid.
    @pl.when(tile_end <= min_len)
    def _full_tile():
        acc_ref[...] += jnp.sum(x, axis=1)

    # Slow path (ragged tail and/or padded last tile): zero rows at/after each
    # element's length.  jnp.where (select) keeps padded-garbage rows from
    # propagating NaN/Inf -- do NOT replace with a multiply mask.
    @pl.when(tile_end > min_len)
    def _ragged_tile():
        rows = tile_start + jax.lax.broadcasted_iota(jnp.int32, (ts, 1), 0)
        for j in range(tb):                                  # tb is small & static
            xj = jnp.where(rows < lens_ref[bi * tb + j], x[j], 0.0)
            acc_ref[j:j + 1, :] += jnp.sum(xj, axis=0, keepdims=True)

    # Final sequence tile: mean = acc / len, then the single tiny matmul.
    @pl.when(si == pl.num_programs(1) - 1)
    def _finish():
        for j in range(tb):
            length = lens_ref[bi * tb + j].astype(jnp.float32)
            acc_ref[j:j + 1, :] = acc_ref[j:j + 1, :] / length
        out = jnp.dot(acc_ref[...], w_ref[...],
                      preferred_element_type=jnp.float32)    # (tb, Dout)
        o_ref[...] = out[:, None, :]


def _classifier_forward(x, w, b, lens, *, seq_tile=None):
    """x: (B,S,Din) f32/bf16, w: (Din,Dout) f32, b: (Dout,) f32, lens: (B,) i32
    -> (B, Dout) f32 : masked mean over the sequence of (x @ w + b)."""
    B, S, Din = x.shape
    Dout = w.shape[1]
    itemsize = jnp.dtype(x.dtype).itemsize

    vmem_cap = _vmem_capacity_bytes()
    tb, ts = _choose_tiles(B, S, Din, Dout, itemsize, vmem_cap, seq_tile)
    grid = (B // tb, pl.cdiv(S, ts))

    cost = pl.CostEstimate(
        flops=B * S * Din + 2 * B * Din * Dout,
        transcendentals=0,
        bytes_accessed=B * S * Din * itemsize + Din * Dout * 4
                       + B * Dout * 4 + B * 4,
    )

    out3 = pl.pallas_call(
        functools.partial(_classifier_kernel, tb=tb),
        out_shape=jax.ShapeDtypeStruct((B, 1, Dout), jnp.float32),
        grid_spec=pltpu.PrefetchScalarGridSpec(
            num_scalar_prefetch=1,
            grid=grid,
            in_specs=[
                # x: tb batch rows x ts sequence rows x full feature dim.
                pl.BlockSpec((tb, ts, Din), lambda bi, si, lens_ref: (bi, si, 0)),
                # weight: constant index -> fetched once, stays VMEM resident.
                pl.BlockSpec((Din, Dout), lambda bi, si, lens_ref: (0, 0)),
            ],
            out_specs=pl.BlockSpec((tb, 1, Dout),
                                   lambda bi, si, lens_ref: (bi, 0, 0)),
            scratch_shapes=[pltpu.VMEM((tb, Din), jnp.float32)],
        ),
        compiler_params=pltpu.CompilerParams(
            dimension_semantics=("parallel", "arbitrary"),
            vmem_limit_bytes=int(min(vmem_cap * 0.85, 96 * 1024 * 1024)),
        ),
        cost_estimate=cost,
    )(lens, x, w)

    # Bias folded in once outside the streaming loop (len*b / len == b).
    return out3[:, 0, :] + b[None, :]


# ---------------------------------------------------------------------------
# Module wrapper mirroring torch LinearClassifier
# ---------------------------------------------------------------------------
class LinearClassifierPallas:
    def __init__(self, input_dim, output_dim, key=None):
        if key is None:
            key = jax.random.PRNGKey(0)
        self.input_dim = input_dim
        self.output_dim = output_dim
        kw, kb = jax.random.split(key)
        bound = 1.0 / math.sqrt(input_dim)
        # Weight stored pre-transposed as (in, out) for the kernel.
        self.w = jax.random.uniform(kw, (input_dim, output_dim),
                                    jnp.float32, -bound, bound)
        self.b = jax.random.uniform(kb, (output_dim,),
                                    jnp.float32, -bound, bound)

    def __call__(self, x, src_lens=None, *, seq_tile=None):
        B, S, _ = x.shape
        if src_lens is None:
            lens = jnp.full((B,), S, dtype=jnp.int32)   # all-valid, /S == mean
        else:
            lens = jnp.asarray(src_lens, dtype=jnp.int32)
        out = _classifier_forward(x, self.w, self.b, lens, seq_tile=seq_tile)
        if self.output_dim == 1:
            # torch.squeeze(output, 2) then mean over dim=1 -> shape (B,)
            out = out[:, 0]
        return out


# ---------------------------------------------------------------------------
# Pure-JAX reference (mirrors the torch forward exactly)
# ---------------------------------------------------------------------------
def _reference(x, w, b, src_lens):
    y = x.astype(jnp.float32) @ w + b                 # (B, S, Dout)
    if y.shape[2] == 1:
        y = y[..., 0]                                 # squeeze(dim=2)
        if src_lens is not None:
            mask = jnp.arange(x.shape[1])[None, :] < src_lens[:, None]
            y = jnp.where(mask, y, 0.0)
            return y.sum(axis=1) / src_lens.astype(y.dtype)
        return y.mean(axis=1)
    if src_lens is not None:
        mask = jnp.arange(x.shape[1])[None, :, None] < src_lens[:, None, None]
        y = jnp.where(mask, y, 0.0)
        return y.sum(axis=1) / src_lens[:, None].astype(y.dtype)
    return y.mean(axis=1)


if __name__ == "__main__":
    key = jax.random.PRNGKey(0)
    k1, k2, k3, k4, k5, k6 = jax.random.split(key, 6)

    # Case 1: Dout=1 head with ragged lengths; seq_tile=8 forces a multi-tile
    # sequence reduction with fully-valid, masked, and padded-ragged tiles.
    B, S, D_IN = 2, 20, 32
    model1 = LinearClassifierPallas(D_IN, 1, key=k1)
    x1 = jax.random.normal(k2, (B, S, D_IN), jnp.float32)
    src_lens = jnp.array([13, 20], dtype=jnp.int32)
    out1 = jax.block_until_ready(model1(x1, src_lens=src_lens, seq_tile=8))
    ref1 = _reference(x1, model1.w, model1.b, src_lens)
    assert out1.shape == (B,), out1.shape
    assert jnp.allclose(out1, ref1, atol=1e-4, rtol=1e-4), (out1, ref1)

    # Case 2: Dout>1, no src_lens, batch-packed blocks (tb=2) on one seq tile.
    model2 = LinearClassifierPallas(D_IN, 8, key=k3)
    x2 = jax.random.normal(k4, (4, 16, D_IN), jnp.float32)
    out2 = jax.block_until_ready(model2(x2))
    ref2 = _reference(x2, model2.w, model2.b, None)
    assert out2.shape == (4, 8), out2.shape
    assert jnp.allclose(out2, ref2, atol=1e-4, rtol=1e-4), (out2, ref2)

    # Case 3: bf16-streamed activations (f32 accumulation), ragged + padded tail.
    model3 = LinearClassifierPallas(64, 1, key=k5)
    x3 = jax.random.normal(k6, (2, 33, 64), jnp.float32).astype(jnp.bfloat16)
    lens3 = jnp.array([33, 7], dtype=jnp.int32)
    out3 = jax.block_until_ready(model3(x3, src_lens=lens3, seq_tile=16))
    ref3 = _reference(x3.astype(jnp.float32), model3.w, model3.b, lens3)
    assert out3.shape == (2,), out3.shape
    assert jnp.allclose(out3, ref3, atol=1e-3, rtol=1e-3), (out3, ref3)

    print("KERNEL_OK")
</pallas_src>

<mosaic_0001>
module attributes {stable_mosaic.version = 11 : i64} {
  func.func @_classifier_kernel(%arg0: i32, %arg1: i32, %arg2: memref<2xi32, #tpu.memory_space<smem>>, %arg3: memref<1x8x32xf32, #tpu.memory_space<vmem>>, %arg4: memref<32x1xf32, #tpu.memory_space<vmem>>, %arg5: memref<1x1x1xf32, #tpu.memory_space<vmem>>, %arg6: memref<1x32xf32, #tpu.memory_space<vmem>>) attributes {dimension_semantics = [#tpu.dimension_semantics<parallel>, #tpu.dimension_semantics<arbitrary>], iteration_bounds = array<i64: 2, 3>, scalar_prefetch = 1 : i64, scratch_operands = 1 : i64, tpu.core_type = #tpu.core_type<tc>, window_params = [{transform_indices = @transform_0, window_bounds = array<i64: 1, 8, 32>}, {pipeline_mode = #tpu.pipeline_mode<synchronous>, transform_indices = @transform_1, window_bounds = array<i64: 32, 1>}, {transform_indices = @transform_2, window_bounds = array<i64: 1, 1, 1>}]} {
    %c0_i32 = arith.constant 0 : i32
    %0 = arith.cmpi eq, %arg1, %c0_i32 : i32
    %1 = arith.extui %0 : i1 to i32
    %c0_i32_0 = arith.constant 0 : i32
    %2 = arith.cmpi ne, %1, %c0_i32_0 : i32
    scf.if %2 {
      %cst = arith.constant 0.000000e+00 : f32
      %18 = vector.broadcast %cst : f32 to vector<1x32xf32>
      %c0_7 = arith.constant 0 : index
      %c0_8 = arith.constant 0 : index
      %19 = vector.load %arg6[%c0_7, %c0_8] : memref<1x32xf32, #tpu.memory_space<vmem>>, vector<1x32xf32>
      tpu.vector_store %arg6[%c0_7, %c0_8], %18 {strides = array<i32>} : memref<1x32xf32, #tpu.memory_space<vmem>>, vector<1x32xf32>,
    } else {
    }
    %c0 = arith.constant 0 : index
    %c0_1 = arith.constant 0 : index
    %c0_2 = arith.constant 0 : index
    %3 = vector.load %arg3[%c0, %c0_1, %c0_2] : memref<1x8x32xf32, #tpu.memory_space<vmem>>, vector<1x8x32xf32>
    %c8_i32 = arith.constant 8 : i32
    %4 = arith.muli %arg1, %c8_i32 : i32
    %c8_i32_3 = arith.constant 8 : i32
    %5 = arith.addi %4, %c8_i32_3 : i32
    %c1_i32 = arith.constant 1 : i32
    %6 = arith.muli %arg0, %c1_i32 : i32
    %7 = arith.index_cast %6 : i32 to index
    %8 = memref.load %arg2[%7] : memref<2xi32, #tpu.memory_space<smem>>
    %9 = arith.cmpi sle, %5, %8 : i32
    %10 = arith.extui %9 : i1 to i32
    %c0_i32_4 = arith.constant 0 : i32
    %11 = arith.cmpi ne, %10, %c0_i32_4 : i32
    scf.if %11 {
      %c0_7 = arith.constant 0 : index
      %c0_8 = arith.constant 0 : index
      %18 = vector.load %arg6[%c0_7, %c0_8] : memref<1x32xf32, #tpu.memory_space<vmem>>, vector<1x32xf32>
      %cst = arith.constant dense<0.000000e+00> : vector<1x32xf32>
      %19 = vector.multi_reduction <add>, %3, %cst [1] : vector<1x8x32xf32> to vector<1x32xf32>
      %20 = arith.addf %18, %19 : vector<1x32xf32>
      %c0_9 = arith.constant 0 : index
      %c0_10 = arith.constant 0 : index
      %21 = vector.load %arg6[%c0_9, %c0_10] : memref<1x32xf32, #tpu.memory_space<vmem>>, vector<1x32xf32>
      tpu.vector_store %arg6[%c0_9, %c0_10], %20 {strides = array<i32>} : memref<1x32xf32, #tpu.memory_space<vmem>>, vector<1x32xf32>,
    } else {
    }
    %12 = arith.cmpi sgt, %5, %8 : i32
    %13 = arith.extui %12 : i1 to i32
    %c0_i32_5 = arith.constant 0 : i32
    %14 = arith.cmpi ne, %13, %c0_i32_5 : i32
    scf.if %14 {
      %18 = tpu.iota {dimensions = array<i32: 0>} : vector<8x1xi32>
      %19 = vector.broadcast %4 : i32 to vector<8x1xi32>
      %20 = arith.addi %19, %18 : vector<8x1xi32>
      %c1_i32_7 = arith.constant 1 : i32
      %21 = arith.muli %arg0, %c1_i32_7 : i32
      %c0_i32_8 = arith.constant 0 : i32
      %22 = arith.addi %21, %c0_i32_8 : i32
      %23 = arith.index_cast %22 : i32 to index
      %24 = memref.load %arg2[%23] : memref<2xi32, #tpu.memory_space<smem>>
      %25 = vector.broadcast %24 : i32 to vector<8x1xi32>
      %26 = arith.cmpi slt, %20, %25 : vector<8x1xi32>
      %27 = vector.shape_cast %3 : vector<1x8x32xf32> to vector<8x32xf32>
      %cst = arith.constant 0.000000e+00 : f32
      %28 = vector.shape_cast %26 : vector<8x1xi1> to vector<8x1xi1>
      %29 = vector.broadcast %28 : vector<8x1xi1> to vector<8x32xi1>
      %30 = vector.broadcast %cst : f32 to vector<8x32xf32>
      %31 = arith.select %29, %27, %30 : vector<8x32xi1>, vector<8x32xf32>
      %c0_9 = arith.constant 0 : index
      %c0_10 = arith.constant 0 : index
      %32 = vector.load %arg6[%c0_9, %c0_10] : memref<1x32xf32, #tpu.memory_space<vmem>>, vector<1x32xf32>
      %cst_11 = arith.constant dense<0.000000e+00> : vector<32xf32>
      %33 = vector.multi_reduction <add>, %31, %cst_11 [0] : vector<8x32xf32> to vector<32xf32>
      %34 = vector.shape_cast %33 : vector<32xf32> to vector<1x32xf32>
      %35 = arith.addf %32, %34 : vector<1x32xf32>
      %c0_12 = arith.constant 0 : index
      %c0_13 = arith.constant 0 : index
      %36 = vector.load %arg6[%c0_12, %c0_13] : memref<1x32xf32, #tpu.memory_space<vmem>>, vector<1x32xf32>
      tpu.vector_store %arg6[%c0_12, %c0_13], %35 {strides = array<i32>} : memref<1x32xf32, #tpu.memory_space<vmem>>, vector<1x32xf32>,
    } else {
    }
    %c2_i32 = arith.constant 2 : i32
    %15 = arith.cmpi eq, %arg1, %c2_i32 : i32
    %16 = arith.extui %15 : i1 to i32
    %c0_i32_6 = arith.constant 0 : i32
    %17 = arith.cmpi ne, %16, %c0_i32_6 : i32
    scf.if %17 {
      %c1_i32_7 = arith.constant 1 : i32
      %18 = arith.muli %arg0, %c1_i32_7 : i32
      %c0_i32_8 = arith.constant 0 : i32
      %19 = arith.addi %18, %c0_i32_8 : i32
      %20 = arith.index_cast %19 : i32 to index
      %21 = memref.load %arg2[%20] : memref<2xi32, #tpu.memory_space<smem>>
      %22 = arith.sitofp %21 : i32 to f32
      %c0_9 = arith.constant 0 : index
      %c0_10 = arith.constant 0 : index
      %23 = vector.load %arg6[%c0_9, %c0_10] : memref<1x32xf32, #tpu.memory_space<vmem>>, vector<1x32xf32>
      %24 = vector.broadcast %22 : f32 to vector<1x32xf32>
      %25 = arith.divf %23, %24 : vector<1x32xf32>
      %c0_11 = arith.constant 0 : index
      %c0_12 = arith.constant 0 : index
      %26 = vector.load %arg6[%c0_11, %c0_12] : memref<1x32xf32, #tpu.memory_space<vmem>>, vector<1x32xf32>
      tpu.vector_store %arg6[%c0_11, %c0_12], %25 {strides = array<i32>} : memref<1x32xf32, #tpu.memory_space<vmem>>, vector<1x32xf32>,
      %c0_13 = arith.constant 0 : index
      %c0_14 = arith.constant 0 : index
      %27 = vector.load %arg6[%c0_13, %c0_14] : memref<1x32xf32, #tpu.memory_space<vmem>>, vector<1x32xf32>
      %c0_15 = arith.constant 0 : index
      %c0_16 = arith.constant 0 : index
      %28 = vector.load %arg4[%c0_15, %c0_16] : memref<32x1xf32, #tpu.memory_space<vmem>>, vector<32x1xf32>
      %cst = arith.constant dense<0.000000e+00> : vector<1x1xf32>
      %29 = tpu.matmul %27, %28, %cst {dimension_numbers = #tpu.dot_dimension_numbers<[1], [0], [0], [1], [0, 0, 1, 1], [], []>} : vector<1x32xf32>, vector<32x1xf32>, vector<1x1xf32> -> vector<1x1xf32>
      %30 = vector.shape_cast %29 : vector<1x1xf32> to vector<1x1x1xf32>
      %c0_17 = arith.constant 0 : index
      %c0_18 = arith.constant 0 : index
      %c0_19 = arith.constant 0 : index
      %31 = vector.load %arg5[%c0_17, %c0_18, %c0_19] : memref<1x1x1xf32, #tpu.memory_space<vmem>>, vector<1x1x1xf32>
      tpu.vector_store %arg5[%c0_17, %c0_18, %c0_19], %30 {strides = array<i32>} : memref<1x1x1xf32, #tpu.memory_space<vmem>>, vector<1x1x1xf32>,
    } else {
    }
    return
  }
  func.func @transform_0(%arg0: i32, %arg1: i32, %arg2: memref<2xi32, #tpu.memory_space<smem>>) -> (i32, i32, i32) {
    %c0_i32 = arith.constant 0 : i32
    %c0_i32_0 = arith.constant 0 : i32
    return %arg0, %arg1, %c0_i32 : i32, i32, i32
  }
  func.func @transform_1(%arg0: i32, %arg1: i32, %arg2: memref<2xi32, #tpu.memory_space<smem>>) -> (i32, i32) {
    %c0_i32 = arith.constant 0 : i32
    %c0_i32_0 = arith.constant 0 : i32
    %c0_i32_1 = arith.constant 0 : i32
    return %c0_i32, %c0_i32_0 : i32, i32
  }
  func.func @transform_2(%arg0: i32, %arg1: i32, %arg2: memref<2xi32, #tpu.memory_space<smem>>) -> (i32, i32, i32) {
    %c0_i32 = arith.constant 0 : i32
    %c0_i32_0 = arith.constant 0 : i32
    %c0_i32_1 = arith.constant 0 : i32
    return %arg0, %c0_i32, %c0_i32_0 : i32, i32, i32
  }
}

</mosaic_0001>

<llo_original>
// kernel: tpu_custom_call.1
$region0: #{tpu_custom_call.1}
  #allocation0 [shape = 'u32[]', space=smem, size = 0x4, offset = 0x4, fixed_abs, tag = 'smem constant byte address 0x4 - core index']
  #allocation1 [shape = 'u32[144,128]{1,0:T(1,128)}', space=vmem, size = 0x12000, scoped, tag = 'internal scratch']
  #allocation2 [shape = 'f32[1,32]{1,0:T(1,128)}', space=vmem, size = 0x200, scoped, tag = 'scratch operand']
  #allocation3 [shape = 's32[1]{0}', space=sflag, size = 0x4, scoped, tag = 'scoped memory for tpu_custom_call.1']
  #allocation4 [shape = 'u8[512]{0}', space=smem, size = 0x200, scoped, tag = 'prefetched SMEM operand 0']
  %s0 = inlined_call_operand.vmem [shape: s32[2], index: 0, kind: input, shape index: {}]
  %s1 = inlined_call_operand.vmem [shape: f32[2,20,32], index: 1, kind: input, shape index: {}]
  %s2 = inlined_call_operand.vmem [shape: f32[32,1], index: 2, kind: input, shape index: {}]
  %s3 = inlined_call_operand.vmem [shape: f32[2,1,1], index: 3, kind: output, shape index: {}]
  %s4 = sld [smem:[#allocation0]]
  $region57: #{tpu_custom_call.1} parent=0
    _
  %s6 = ssub.s32 1, %s4
  %s7 = scalar_select 0, %s6, %s4
  %s8 = sshll.u32 %s0, 4
  %s9 = int_to_ptr.vmem [resolvable:$true] %s8
  %11 = dma.vmem_to_smem %s9, 16, [#allocation4], [#allocation3]
  %12 = dma.done [#allocation3], 16
  %13 = sfence
  loop: start=0, step=1, limit=8
  $region2: #{tpu_custom_call.1} parent=0 // loop_pre_header
    _
  $region3: #{tpu_custom_call.1} parent=0 // loop_header
    %s15 = sphi 0, %s19
    %p16 = scmp.ge.s32.totalorder %s15, 8
    %s22 = sphi 0, %s34
    %s23 = sphi 0, %s30
    %s24 = sphi 0, %s22
    %s25 = sphi 0, %s23
    %s26 = sphi 0, %s24
    %s27 = sphi 0, %s25
    %s39 = sphi 0, %s41
    %s42 = sphi 0, %s39
    %s43 = sphi 0, %s42
    %s59 = sphi 0, %s43
    %s63 = sphi 0, %s63
    %s65 = sphi 0, %s63
    %s66 = sphi 0, %s65
    %s80 = sphi 0, %s66
    %s86 = sphi 0, %s88
    %s89 = sphi 0, %s86
    %s90 = sphi 0, %s89
    %s106 = sphi 0, %s90
  $region4: #{tpu_custom_call.1} parent=0 // loop_header_branch
    %18 = sbr.rel (%p16) target = $region8
  $region5: #{tpu_custom_call.1} parent=0 // loop_body
    %s20 = ssub.s32 %s15, 1
    %s21 = ssub.s32 %s15, 2
    %s28 = sadd.s32 1, %s23
    %p29 = scmp.ge.s32.totalorder %s28, 3
    %s30 = scalar_select %p29, 0, %s28
    %s31 = sadd.s32 1, %s22
    %s32 = scalar_select %p29, %s31, %s22
    %p33 = scmp.ge.s32.totalorder %s32, 2
    %s34 = scalar_select %p33, 0, %s32
    %s35 = ssub.s32 %s22, %s34
    %s36 = ssub.s32 %s23, %s30
    %s37 = sor.u32 %s35, %s36
    %p38 = scmp.eq.s32.totalorder %s37, 0
    %s40 = sadd.s32 %s39, 1
    %s41 = scalar_select %p38, %s39, %s40
    %p44 = pneg %p38
    %p45 = scmp.eq.s32.totalorder %s15, 5
    %p46 = por %p44, %p45
    %p47 = scmp.ne.s32.totalorder %s39, %s42
    %p48 = scmp.eq.s32.totalorder %s15, 0
    %p49 = por %p47, %p48
    %p50 = scmp.ne.s32.totalorder %s39, %s42
    %p51 = scmp.eq.s32.totalorder %s20, 5
    %p52 = por %p50, %p51
    %p53 = scmp.ne.s32.totalorder %s42, %s43
    %p54 = scmp.eq.s32.totalorder %s20, 0
    %p55 = por %p53, %p54
    %p56 = scmp.ne.s32.totalorder %s42, %s43
    %p57 = scmp.eq.s32.totalorder %s21, 5
    %p58 = por %p56, %p57
    %p60 = scmp.ne.s32.totalorder %s43, %s59
    %p61 = scmp.eq.s32.totalorder %s21, 0
    %p62 = por %p60, %p61
    %s64 = sadd.s32 %s63, 1
    %p67 = scmp.eq.s32.totalorder %s15, 5
    %p68 = scmp.ne.s32.totalorder %s63, %s65
    %p69 = scmp.eq.s32.totalorder %s15, 0
    %p70 = por %p68, %p69
    %p71 = scmp.ne.s32.totalorder %s63, %s65
    %p72 = scmp.eq.s32.totalorder %s20, 5
    %p73 = por %p71, %p72
    %p74 = scmp.ne.s32.totalorder %s65, %s66
    %p75 = scmp.eq.s32.totalorder %s20, 0
    %p76 = por %p74, %p75
    %p77 = scmp.ne.s32.totalorder %s65, %s66
    %p78 = scmp.eq.s32.totalorder %s21, 5
    %p79 = por %p77, %p78
    %p81 = scmp.ne.s32.totalorder %s66, %s80
    %p82 = scmp.eq.s32.totalorder %s21, 0
    %p83 = por %p81, %p82
    %s84 = ssub.s32 %s22, %s34
    %p85 = scmp.eq.s32.totalorder %s84, 0
    %s87 = sadd.s32 %s86, 1
    %s88 = scalar_select %p85, %s86, %s87
    %p91 = pneg %p85
    %p92 = scmp.eq.s32.totalorder %s15, 5
    %p93 = por %p91, %p92
    %p94 = scmp.ne.s32.totalorder %s86, %s89
    %p95 = scmp.eq.s32.totalorder %s15, 0
    %p96 = por %p94, %p95
    %p97 = scmp.ne.s32.totalorder %s86, %s89
    %p98 = scmp.eq.s32.totalorder %s20, 5
    %p99 = por %p97, %p98
    %p100 = scmp.ne.s32.totalorder %s89, %s90
    %p101 = scmp.eq.s32.totalorder %s20, 0
    %p102 = por %p100, %p101
    %p103 = scmp.ne.s32.totalorder %s89, %s90
    %p104 = scmp.eq.s32.totalorder %s21, 5
    %p105 = por %p103, %p104
    %p107 = scmp.ne.s32.totalorder %s90, %s106
    %p108 = scmp.eq.s32.totalorder %s21, 0
    %p109 = por %p107, %p108
    %p110 = scmp.le.s32.totalorder 1, %s15
    %p111 = scmp.lt.s32.totalorder %s15, 7
    %p112 = pnand %p110, %p111
    %p113 = pneg %p112
    // Predicated region
    $region9: #{tpu_custom_call.1} parent=5 // pred_check
      _
    $region10: #{tpu_custom_call.1} parent=5 // pred_check_branch
      %115 = sbr.rel (%p112) target = $region12
    $region11: #{tpu_custom_call.1} parent=5 // pred_region
      %s116 = ssub.s32 %s15, 1
      // Predicated region
      $region13: #{tpu_custom_call.1} parent=11 // pred_check
        %p117 = pneg %p76
      $region14: #{tpu_custom_call.1} parent=11 // pred_check_branch
        %119 = sbr.rel (%p117) target = $region16
      $region15: #{tpu_custom_call.1} parent=11 // pred_region
        _
      $region16: #{tpu_custom_call.1} parent=11 // pred_fallthru
        _
    $region12: #{tpu_custom_call.1} parent=5 // pred_fallthru
      _
    %p120 = scmp.lt.s32.totalorder %s15, 6
    // Predicated region
    $region17: #{tpu_custom_call.1} parent=5 // pred_check
      %p121 = pneg %p120
    $region18: #{tpu_custom_call.1} parent=5 // pred_check_branch
      %123 = sbr.rel (%p121) target = $region20
    $region19: #{tpu_custom_call.1} parent=5 // pred_region
      // Predicated region
      $region21: #{tpu_custom_call.1} parent=19 // pred_check
        %p124 = pneg %p49
      $region22: #{tpu_custom_call.1} parent=19 // pred_check_branch
        %126 = sbr.rel (%p124) target = $region24
      $region23: #{tpu_custom_call.1} parent=19 // pred_region
        %p127 = scmp.lt.s32.totalorder %s22, 1
        %s128 = scalar_select %p127, %s22, 1
        %p129 = scmp.lt.s32.totalorder %s23, 2
        %s130 = scalar_select %p129, %s23, 2
        %s131 = smul.addr %s128, 3
        %s132 = sadd.s32 %s130, %s131
        %s133 = smul.addr %s132, 8
        %s134 = scalar_lea.vmem %s1, %s133
      $region24: #{tpu_custom_call.1} parent=19 // pred_fallthru
        _
    $region20: #{tpu_custom_call.1} parent=5 // pred_fallthru
      _
    %p135 = scmp.le.s32.totalorder 1, %s15
    %p136 = scmp.lt.s32.totalorder %s15, 7
    %p137 = pnand %p135, %p136
    %p138 = pneg %p137
    // Predicated region
    $region25: #{tpu_custom_call.1} parent=5 // pred_check
      _
    $region26: #{tpu_custom_call.1} parent=5 // pred_check_branch
      %140 = sbr.rel (%p137) target = $region28
    $region27: #{tpu_custom_call.1} parent=5 // pred_region
      %s141 = ssub.s32 %s15, 1
      %p142 = scmp.lt.s32.totalorder %s24, 1
      %s143 = scalar_select %p142, %s24, 1
      %p144 = scmp.lt.s32.totalorder %s25, 2
      %s145 = scalar_select %p144, %s25, 2
      %s146 = smul.addr %s143, 3
      %s147 = sadd.s32 %s145, %s146
      %s148 = smul.addr %s147, 8
      %s149 = scalar_lea.vmem %s1, %s148
      %p150 = pneg %p55
      %p151 = pneg %p52
      %p152 = pneg %p76
      %p153 = pneg %p73
      %p154 = pneg %p102
      %p155 = pneg %p99
      %p156 = scmp.lt.s32.totalorder %s24, 1
      %s157 = scalar_select %p156, %s24, 1
      %s158 = scalar_lea.vmem %s3, %s157
      %p159 = scmp.lt.s32.totalorder %s24, 1
      %s160 = scalar_select %p159, %s24, 1
      %p161 = scmp.lt.s32.totalorder %s25, 2
      %s162 = scalar_select %p161, %s25, 2
      %s163 = smul.addr %s160, 3
      %s164 = sadd.s32 %s162, %s163
      %s165 = smul.addr %s164, 8
      %s166 = scalar_lea.vmem %s1, %s165
      %p167 = scmp.lt.s32.totalorder %s24, 1
      %s168 = scalar_select %p167, %s24, 1
      %s169 = scalar_lea.vmem %s3, %s168
      %p170 = scmp.eq.s32.totalorder %s25, 0
      // Predicated region
      $region29: #{tpu_custom_call.1} parent=27 // pred_check
        %p171 = pneg %p170
      $region30: #{tpu_custom_call.1} parent=27 // pred_check_branch
        %173 = sbr.rel (%p171) target = $region32
      $region31: #{tpu_custom_call.1} parent=27 // pred_region
        %vm174 = vcmask 253952
        %175 = vst.msk [vmem:[#allocation2] sm:$0x1] %vm174, 0.0
      $region32: #{tpu_custom_call.1} parent=27 // pred_fallthru
        _
      %v176 = vld [vmem:[%s166] sm:$0xff]
      %s177 = smul.u32 %s25, 8
      %s178 = sadd.s32 %s177, 8
      %s179 = sld [smem:[#allocation4 + %s24]]
      %p180 = scmp.le.s32.totalorder %s178, %s179
      // Predicated region
      $region33: #{tpu_custom_call.1} parent=27 // pred_check
        %p181 = pneg %p180
      $region34: #{tpu_custom_call.1} parent=27 // pred_check_branch
        %183 = sbr.rel (%p181) target = $region36
      $region35: #{tpu_custom_call.1} parent=27 // pred_region
        %v184 = vld [vmem:[#allocation2] sm:$0x1]
        %vm185 = vcmask 261120
        %v186 = vsel %vm185, %v176, 0.0
        %v187 = vrot.slane %v186, 4
        %v188 = vadd.f32 %v186, %v187
        %v189 = vrot.slane %v188, 2
        %v190 = vadd.f32 %v188, %v189
        %v191 = vrot.slane %v190, 1
        %v192 = vadd.f32 %v190, %v191
        %v193 = vadd.f32 %v184, %v192
        %vm194 = vcmask 253952
        %195 = vst.msk [vmem:[#allocation2] sm:$0x1] %vm194, %v193
      $region36: #{tpu_custom_call.1} parent=27 // pred_fallthru
        _
      %p196 = scmp.gt.s32.totalorder %s178, %s179
      // Predicated region
      $region37: #{tpu_custom_call.1} parent=27 // pred_check
        %p197 = pneg %p196
      $region38: #{tpu_custom_call.1} parent=27 // pred_check_branch
        %199 = sbr.rel (%p197) target = $region40
      $region39: #{tpu_custom_call.1} parent=27 // pred_region
        %v200 = vlaneseq
        %v201 = vshrl.u32 %v200, 7
        %v202 = vstv %s177
        %v203 = vadd.s32 %v202, %v201
        %s204 = sld [smem:[#allocation4 + %s24]]
        %v205 = vstv %s204
        %vm206 = vcmp.lt.s32.totalorder %v203, %v205
        %v207 = vsel %vm206, 1, 0
        %vm208 = vcmp.eq.s32.totalorder %v207, 1
        %v209 = vsel %vm208, %v176, 0.0
        %v210 = vld [vmem:[#allocation2] sm:$0x1]
        %vm211 = vcmask 261120
        %v212 = vsel %vm211, %v209, 0.0
        %v213 = vrot.slane %v212, 4
        %v214 = vadd.f32 %v212, %v213
        %v215 = vrot.slane %v214, 2
        %v216 = vadd.f32 %v214, %v215
        %v217 = vrot.slane %v216, 1
        %v218 = vadd.f32 %v216, %v217
        %v219 = vadd.f32 %v210, %v218
        %vm220 = vcmask 253952
        %221 = vst.msk [vmem:[#allocation2] sm:$0x1] %vm220, %v219
      $region40: #{tpu_custom_call.1} parent=27 // pred_fallthru
        _
      %p222 = scmp.eq.s32.totalorder %s25, 2
      // Predicated region
      $region41: #{tpu_custom_call.1} parent=27 // pred_check
        %p223 = pneg %p222
      $region42: #{tpu_custom_call.1} parent=27 // pred_check_branch
        %225 = sbr.rel (%p223) target = $region44
      $region43: #{tpu_custom_call.1} parent=27 // pred_region
        %s226 = sld [smem:[#allocation4 + %s24]]
        %s227 = scvt.s32.f32 %s226
        %v228 = vld [vmem:[#allocation2] sm:$0x1]
        %v229 = vstv %s227
        %v230 = vrcp.pop %v229
        %v231 = vmul.f32 %v228, %v230
        %vm232 = vcmask 253952
        %233 = vst.msk [vmem:[#allocation2] sm:$0x1] %vm232, %v231
        %v234 = vld [vmem:[#allocation2] sm:$0x1]
        %v235 = vld [vmem:[%s2] sm:$0xff]
        %v236 = vld [vmem:[%s2 + $0x8] sm:$0xff]
        %v237 = vld [vmem:[%s2 + $0x10] sm:$0xff]
        %v238 = vld [vmem:[%s2 + $0x18] sm:$0xff]
        %vm239 = vcmask 261120
        %v241 = vsel %vm239, %v234, 0
        %243 = vmatprep.subr.mxu0 0.0
        %244 = vmatpush1.msra.mxu0 %v235
        %245 = vmatprep.subr.mxu0 0.0
        %246 = vmatpush1.msra.mxu0 %v236
        %247 = vmatprep.subr.mxu0 0.0
        %248 = vmatpush1.msra.mxu0 %v237
        %249 = vmatprep.subr.mxu0 0.0
        %250 = vmatpush1.msra.mxu0 %v238
        %251 = vmatprep.subr.mxu0 0.0
        %252 = vmatpush1.msra.mxu0 0.0
        %253 = vmatprep.subr.mxu0 0.0
        %254 = vmatpush1.msra.mxu0 0.0
        %255 = vmatprep.subr.mxu0 0.0
        %256 = vmatpush1.msra.mxu0 0.0
        %257 = vmatprep.subr.mxu0 0.0
        %258 = vmatpush1.msra.mxu0 0.0
        %259 = vmatprep.subr.mxu0 0.0
        %260 = vmatpush1.msra.mxu0 0.0
        %261 = vmatprep.subr.mxu0 0.0
        %262 = vmatpush1.msra.mxu0 0.0
        %263 = vmatprep.subr.mxu0 0.0
        %264 = vmatpush1.msra.mxu0 0.0
        %265 = vmatprep.subr.mxu0 0.0
        %266 = vmatpush1.msra.mxu0 0.0
        %267 = vmatprep.subr.mxu0 0.0
        %268 = vmatpush1.msra.mxu0 0.0
        %269 = vmatprep.subr.mxu0 0.0
        %270 = vmatpush1.msra.mxu0 0.0
        %271 = vmatprep.subr.mxu0 0.0
        %272 = vmatpush1.msra.mxu0 0.0
        %273 = vmatprep.subr.mxu0 0.0
        %274 = vmatpush1.msra.mxu0 0.0
        %275 = vmatprep.subr.mxu0 0.0
        %276 = vmatpush1.msra.mxu0 0.0
        %277 = vmatprep.subr.mxu0 0.0
        %278 = vmatpush1.msra.mxu0 0.0
        %279 = vmatprep.subr.mxu0 0.0
        %280 = vmatpush1.msra.mxu0 0.0
        %281 = vmatprep.subr.mxu0 0.0
        %282 = vmatpush1.msra.mxu0 0.0
        %283 = vmatprep.subr.mxu0 0.0
        %284 = vmatpush1.msra.mxu0 0.0
        %285 = vmatprep.subr.mxu0 0.0
        %286 = vmatpush1.msra.mxu0 0.0
        %287 = vmatprep.subr.mxu0 0.0
        %288 = vmatpush1.msra.mxu0 0.0
        %289 = vmatprep.subr.mxu0 0.0
        %290 = vmatpush1.msra.mxu0 0.0
        %291 = vmatprep.subr.mxu0 0.0
        %292 = vmatpush1.msra.mxu0 0.0
        %293 = vmatprep.subr.mxu0 0.0
        %294 = vmatpush1.msra.mxu0 0.0
        %295 = vmatprep.subr.mxu0 0.0
        %296 = vmatpush1.msra.mxu0 0.0
        %297 = vmatprep.subr.mxu0 0.0
        %298 = vmatpush1.msra.mxu0 0.0
        %299 = vmatprep.subr.mxu0 0.0
        %300 = vmatpush1.msra.mxu0 0.0
        %301 = vmatprep.subr.mxu0 0.0
        %302 = vmatpush1.msra.mxu0 0.0
        %303 = vmatprep.subr.mxu0 0.0
        %304 = vmatpush1.msra.mxu0 0.0
        %305 = vmatprep.subr.mxu0 0.0
        %306 = vmatpush1.msra.mxu0 0.0
        %307 = vmatprep.mubr.f32.mxu0 0.0
        %308 = vmatmul.mubr.f32.gmra.mrb[0].mxu0 %v241
        %v309 = vpop.f32.mrb[0].mxu0
        %v310 = vadd.f32 0.0, %v309
        %v311 = vpop.f32.mrb[0].mxu0
        %312 = vdwg.mxu0
        %vm313 = vcmask 0
        %314 = vst.msk [vmem:[%s169] sm:$0x1] %vm313, %v310
      $region44: #{tpu_custom_call.1} parent=27 // pred_fallthru
        _
      %p315 = scmp.lt.s32.totalorder %s24, 1
      %s316 = scalar_select %p315, %s24, 1
      %s317 = scalar_lea.vmem %s3, %s316
      // Predicated region
      $region45: #{tpu_custom_call.1} parent=27 // pred_check
        %p318 = pneg %p99
      $region46: #{tpu_custom_call.1} parent=27 // pred_check_branch
        %320 = sbr.rel (%p318) target = $region48
      $region47: #{tpu_custom_call.1} parent=27 // pred_region
        _
      $region48: #{tpu_custom_call.1} parent=27 // pred_fallthru
        _
    $region28: #{tpu_custom_call.1} parent=5 // pred_fallthru
      _
    %p321 = scmp.le.s32.totalorder 2, %s15
    // Predicated region
    $region49: #{tpu_custom_call.1} parent=5 // pred_check
      %p322 = pneg %p321
    $region50: #{tpu_custom_call.1} parent=5 // pred_check_branch
      %324 = sbr.rel (%p322) target = $region52
    $region51: #{tpu_custom_call.1} parent=5 // pred_region
      %s325 = ssub.s32 %s15, 2
      // Predicated region
      $region53: #{tpu_custom_call.1} parent=51 // pred_check
        %p326 = pneg %p105
      $region54: #{tpu_custom_call.1} parent=51 // pred_check_branch
        %328 = sbr.rel (%p326) target = $region56
      $region55: #{tpu_custom_call.1} parent=51 // pred_region
        %p329 = scmp.lt.s32.totalorder %s26, 1
        %s330 = scalar_select %p329, %s26, 1
        %s331 = scalar_lea.vmem %s3, %s330
      $region56: #{tpu_custom_call.1} parent=51 // pred_fallthru
        _
    $region52: #{tpu_custom_call.1} parent=5 // pred_fallthru
      _
  $region6: #{tpu_custom_call.1} parent=0 // loop_footer
    %s19 = sadd.s32 1, %s15
  $region7: #{tpu_custom_call.1} parent=0 // loop_footer_branch
    %14 = sbr.rel target = $region3
  $region8: #{tpu_custom_call.1} parent=0 // loop_exit
    _

</llo_original>
